<compile_context>
chip_gen: v7x
topology: tpu7x:2x2x1
jax: 0.10.0
libtpu: 0.0.40
codegen_flags: <defaults>
</compile_context>

<pallas_src>
import jax
import jax.numpy as jnp
from jax.experimental import pallas as pl
from jax.experimental.pallas import tpu as pltpu


# ------------------------------- kernel -------------------------------------

def fusion_kernel(ques_ref, ans_ref, out_ref):
    # ques_ref: (TN, E)   question-embedding tile
    # ans_ref : (TN, 1)   int32 answer indices (0 or 1)
    # out_ref : (TN, 2E)  fused output tile
    q = ques_ref[...]
    E = q.shape[-1]
    left_sel = (ans_ref[...] == 1).astype(q.dtype)     # (TN, 1)
    left = q * left_sel                                 # ans==1 -> left half carries q
    out_ref[:, :E] = left
    out_ref[:, E:] = q - left                           # ans==0 -> right half carries q


# ----------------------------- tile sizing -----------------------------------

def _round_up(x, m):
    return ((x + m - 1) // m) * m


def _row_bytes(cols, itemsize):
    # VMEM rows are lane-padded to a multiple of 128 elements.
    return _round_up(max(cols, 1), 128) * itemsize


def _vmem_limits():
    """(tile budget, vmem_limit_bytes) derived from the physical VMEM size."""
    try:
        phys = int(getattr(pltpu.get_tpu_info(), "vmem_capacity_bytes", 64 << 20))
    except Exception:
        phys = 64 << 20                     # conservative fallback (v7x per-core VMEM)
    vmem_limit = min((phys * 3) // 4, 96 << 20)   # v5e/v6e: 96 MiB, v7x: 48 MiB
    budget = min(phys // 2, 64 << 20)             # v5e/v6e: 64 MiB, v7x: 32 MiB
    return budget, vmem_limit


def _pick_tile_rows(n_rows, emb_dim, dtype, vmem_budget_bytes):
    """Largest sublane-aligned row tile whose double-buffered streams fit the budget."""
    itemsize = jnp.dtype(dtype).itemsize
    # Double-buffered streams: q (E wide), out (2E wide), ans (lane-padded int32 col).
    bytes_per_row = 2 * (_row_bytes(emb_dim, itemsize)
                         + _row_bytes(2 * emb_dim, itemsize)
                         + _row_bytes(1, 4))
    max_rows = max(vmem_budget_bytes // bytes_per_row, 1)
    sub = {4: 8, 2: 16, 1: 32}.get(itemsize, 8)    # sublane packing granularity
    tile = min(int(max_rows), 8192, max(n_rows, sub))
    # Keep >= ~4 grid blocks for large N (megacore sharding + pipeline overlap),
    # but never shrink below 2048 rows for that reason alone.
    split_cap = max(2048, _round_up(pl.cdiv(n_rows, 4), sub))
    tile = min(tile, split_cap)
    tile = max((tile // sub) * sub, sub)
    return tile


# ------------------------------- wrapper -------------------------------------

def fusion_forward(ques_emb, pad_answer, *, tile_rows=None):
    B, S, E = ques_emb.shape
    N = B * S

    budget, vmem_limit = _vmem_limits()
    if tile_rows is None:
        tile_rows = _pick_tile_rows(N, E, ques_emb.dtype, budget)

    q2 = ques_emb.reshape(N, E)                          # free reshape (contiguous)
    ans2 = pad_answer.reshape(N, 1).astype(jnp.int32)

    # Ragged tail block handled by Pallas: reads of the out-of-range rows are
    # padded (unused), writes are clipped.  No wrapper pad / slice copies.
    n_blocks = pl.cdiv(N, tile_rows)

    out = pl.pallas_call(
        fusion_kernel,
        out_shape=jax.ShapeDtypeStruct((N, 2 * E), ques_emb.dtype),
        grid=(n_blocks,),
        in_specs=[
            pl.BlockSpec((tile_rows, E), lambda i: (i, 0)),
            pl.BlockSpec((tile_rows, 1), lambda i: (i, 0)),
        ],
        out_specs=pl.BlockSpec((tile_rows, 2 * E), lambda i: (i, 0)),
        compiler_params=pltpu.CompilerParams(
            dimension_semantics=("parallel",),
            vmem_limit_bytes=int(vmem_limit),
        ),
    )(q2, ans2)

    return out.reshape(B, S, 2 * E)


# --------------------------- reference (pure JAX) ----------------------------

def make_transform_matrix(emb_dim, dtype=jnp.float32):
    tm = jnp.zeros((2, 2 * emb_dim), dtype=dtype)
    tm = tm.at[0, emb_dim:].set(1.0)
    tm = tm.at[1, :emb_dim].set(1.0)
    return tm


def fusion_ref(ques_emb, pad_answer, transform_matrix):
    qq = jnp.concatenate([ques_emb, ques_emb], axis=-1)
    a_emb = jnp.take(transform_matrix, pad_answer, axis=0)
    return qq * a_emb


if __name__ == "__main__":
    key = jax.random.PRNGKey(0)

    # Case 1: tile-aligned small shape (B=2, S=8, E=32).
    B, S, E = 2, 8, 32
    kq, ka, key = jax.random.split(key, 3)
    ques_emb = jax.random.normal(kq, (B, S, E), dtype=jnp.float32)
    pad_answer = jax.random.randint(ka, (B, S), 0, 2, dtype=jnp.int32)

    out = jax.block_until_ready(fusion_forward(ques_emb, pad_answer))
    ref = fusion_ref(ques_emb, pad_answer, make_transform_matrix(E))
    assert out.shape == (B, S, 2 * E)
    assert jnp.allclose(out, ref, atol=1e-6, rtol=1e-6), "mismatch vs reference (aligned)"

    # Case 2: ragged row count (B=3, S=7 -> N=21, not a sublane multiple) to
    # exercise the no-pad / clipped-tail path.
    B2, S2 = 3, 7
    kq2, ka2 = jax.random.split(key)
    ques_emb2 = jax.random.normal(kq2, (B2, S2, E), dtype=jnp.float32)
    pad_answer2 = jax.random.randint(ka2, (B2, S2), 0, 2, dtype=jnp.int32)

    out2 = jax.block_until_ready(fusion_forward(ques_emb2, pad_answer2))
    ref2 = fusion_ref(ques_emb2, pad_answer2, make_transform_matrix(E))
    assert out2.shape == (B2, S2, 2 * E)
    assert jnp.allclose(out2, ref2, atol=1e-6, rtol=1e-6), "mismatch vs reference (ragged)"

    print("KERNEL_OK")
</pallas_src>

<mosaic_0001>
module attributes {stable_mosaic.version = 11 : i64} {
  func.func @fusion_kernel(%arg0: i32, %arg1: memref<16x32xf32, #tpu.memory_space<vmem>>, %arg2: memref<16x1xi32, #tpu.memory_space<vmem>>, %arg3: memref<16x64xf32, #tpu.memory_space<vmem>>) attributes {dimension_semantics = [#tpu.dimension_semantics<parallel>], iteration_bounds = array<i64: 1>, scalar_prefetch = 0 : i64, scratch_operands = 0 : i64, tpu.core_type = #tpu.core_type<tc>, window_params = [{transform_indices = @transform_0, window_bounds = array<i64: 16, 32>}, {transform_indices = @transform_1, window_bounds = array<i64: 16, 1>}, {transform_indices = @transform_2, window_bounds = array<i64: 16, 64>}]} {
    %c0 = arith.constant 0 : index
    %c0_0 = arith.constant 0 : index
    %0 = vector.load %arg1[%c0, %c0_0] : memref<16x32xf32, #tpu.memory_space<vmem>>, vector<16x32xf32>
    %c0_1 = arith.constant 0 : index
    %c0_2 = arith.constant 0 : index
    %1 = vector.load %arg2[%c0_1, %c0_2] : memref<16x1xi32, #tpu.memory_space<vmem>>, vector<16x1xi32>
    %c1_i32 = arith.constant 1 : i32
    %2 = vector.broadcast %c1_i32 : i32 to vector<16x1xi32>
    %3 = arith.cmpi eq, %1, %2 : vector<16x1xi32>
    %4 = arith.extui %3 : vector<16x1xi1> to vector<16x1xi32>
    %5 = arith.sitofp %4 : vector<16x1xi32> to vector<16x1xf32>
    %6 = vector.broadcast %5 : vector<16x1xf32> to vector<16x32xf32>
    %7 = arith.mulf %0, %6 : vector<16x32xf32>
    %c0_3 = arith.constant 0 : index
    %c0_4 = arith.constant 0 : index
    %8 = vector.load %arg3[%c0_3, %c0_4] : memref<16x64xf32, #tpu.memory_space<vmem>>, vector<16x32xf32>
    tpu.vector_store %arg3[%c0_3, %c0_4], %7 {strides = array<i32>} : memref<16x64xf32, #tpu.memory_space<vmem>>, vector<16x32xf32>,
    %9 = arith.subf %0, %7 : vector<16x32xf32>
    %c0_5 = arith.constant 0 : index
    %c32 = arith.constant 32 : index
    %10 = vector.load %arg3[%c0_5, %c32] : memref<16x64xf32, #tpu.memory_space<vmem>>, vector<16x32xf32>
    tpu.vector_store %arg3[%c0_5, %c32], %9 {strides = array<i32>} : memref<16x64xf32, #tpu.memory_space<vmem>>, vector<16x32xf32>,
    return
  }
  func.func @transform_0(%arg0: i32) -> (i32, i32) {
    %c0_i32 = arith.constant 0 : i32
    %c0_i32_0 = arith.constant 0 : i32
    return %arg0, %c0_i32 : i32, i32
  }
  func.func @transform_1(%arg0: i32) -> (i32, i32) {
    %c0_i32 = arith.constant 0 : i32
    %c0_i32_0 = arith.constant 0 : i32
    return %arg0, %c0_i32 : i32, i32
  }
  func.func @transform_2(%arg0: i32) -> (i32, i32) {
    %c0_i32 = arith.constant 0 : i32
    %c0_i32_0 = arith.constant 0 : i32
    return %arg0, %c0_i32 : i32, i32
  }
}

</mosaic_0001>

<llo_original>
// kernel: tpu_custom_call.1
$region0: #{tpu_custom_call.1}
  #allocation0 [shape = 'u32[]', space=smem, size = 0x4, offset = 0x4, fixed_abs, tag = 'smem constant byte address 0x4 - core index']
  #allocation1 [shape = 'u32[144,128]{1,0:T(1,128)}', space=vmem, size = 0x12000, scoped, tag = 'internal scratch']
  %s0 = inlined_call_operand.vmem [shape: f32[16,32], index: 0, kind: input, shape index: {}]
  %s1 = inlined_call_operand.vmem [shape: s32[16,1], index: 1, kind: input, shape index: {}]
  %s2 = inlined_call_operand.hbm [shape: f32[16,64], index: 2, kind: output, shape index: {}]
  %s3 = sld [smem:[#allocation0]]
  $region18: #{tpu_custom_call.1} parent=0
    _
  %s5 = ssub.s32 1, %s3
  %s6 = scalar_select 0, %s5, %s3
  $region1: #{tpu_custom_call.1} parent=0
    #allocation2 [shape = 'u8[8192]{0}', space=vmem, size = 0x2000, scoped, tag = 'output window, operand 0, single buffered']
    #allocation3 [shape = 's32[1]{0}', space=sflag, size = 0x4, scoped, tag = 'scoped memory for tpu_custom_call.1']
    %7 = vsyncpa [#allocation3], 0
    // Predicated region
    $region2: #{tpu_custom_call.1} parent=1 // pred_check
      _
    $region3: #{tpu_custom_call.1} parent=1 // pred_check_branch
      %9 = sbr.rel (0) target = $region5
    $region4: #{tpu_custom_call.1} parent=1 // pred_region
      _
    $region5: #{tpu_custom_call.1} parent=1 // pred_fallthru
      _
    // Predicated region
    $region6: #{tpu_custom_call.1} parent=1 // pred_check
      _
    $region7: #{tpu_custom_call.1} parent=1 // pred_check_branch
      %11 = sbr.rel (0) target = $region9
    $region8: #{tpu_custom_call.1} parent=1 // pred_region
      _
    $region9: #{tpu_custom_call.1} parent=1 // pred_fallthru
      _
    %v12 = vld [vmem:[%s0] sm:$0xff]
    %v13 = vld [vmem:[%s0 + $0x8] sm:$0xff]
    %v14 = vld [vmem:[%s1] sm:$0xff]
    %v15 = vld [vmem:[%s1 + $0x8] sm:$0xff]
    %vm16 = vcmp.eq.s32.totalorder %v14, 1
    %vm17 = vcmp.eq.s32.totalorder %v15, 1
    %v18 = vsel %vm16, 1, 0
    %v19 = vsel %vm17, 1, 0
    %v20 = vcvt.s32.f32 %v18
    %v21 = vcvt.s32.f32 %v19
    %23 = vset.pattern.permute.xlu0 0
    %24 = vperm.xlu0 %23, %v20
    %v25 = vpop.permute.xlu0 %24
    %28 = vset.pattern.permute.xlu0 0
    %29 = vperm.xlu0 %28, %v21
    %v30 = vpop.permute.xlu0 %29
    %v32 = vmul.f32 %v12, %v25
    %v33 = vmul.f32 %v13, %v30
    %vm34 = vcmask 261120
    %35 = vst.msk [vmem:[#allocation2] sm:$0xff] %vm34, %v32
    %36 = vst.msk [vmem:[#allocation2 + $0x8] sm:$0xff] %vm34, %v33
    %v37 = vsub.f32 %v12, %v32
    %v38 = vsub.f32 %v13, %v33
    %41 = vrot.lane.b32.xlu0 %v37, 32
    %v42 = vpop.permute.xlu0 %41
    %43 = vrot.lane.b32.xlu0 %v38, 32
    %v44 = vpop.permute.xlu0 %43
    %vm47 = vcmask 523520
    %48 = vst.msk [vmem:[#allocation2] sm:$0xff] %vm47, %v42
    %49 = vst.msk [vmem:[#allocation2 + $0x8] sm:$0xff] %vm47, %v44
    // Predicated region
    $region10: #{tpu_custom_call.1} parent=1 // pred_check
      _
    $region11: #{tpu_custom_call.1} parent=1 // pred_check_branch
      %51 = sbr.rel (0) target = $region13
    $region12: #{tpu_custom_call.1} parent=1 // pred_region
      %s53 = ssub.s32 256, 256
      %54 = vsyncadd [#allocation3], %s53
      %s55 = sshll.u32 [#allocation2], 4
      %s56 = int_to_ptr.vmem [resolvable:$true] %s55
      %61 = dma.vmem_to_hbm [thread:$0]  %s56, 256, %s2, [#allocation3], 128, 128, 8
    $region13: #{tpu_custom_call.1} parent=1 // pred_fallthru
      _
    // Predicated region
    $region14: #{tpu_custom_call.1} parent=1 // pred_check
      _
    $region15: #{tpu_custom_call.1} parent=1 // pred_check_branch
      %63 = sbr.rel (0) target = $region17
    $region16: #{tpu_custom_call.1} parent=1 // pred_region
      %64 = dma.done [#allocation3], 256
    $region17: #{tpu_custom_call.1} parent=1 // pred_fallthru
      _
    %65 = vsyncpa [#allocation3], 1

</llo_original>
